<compile_context>
chip_gen: v7x
topology: tpu7x:2x2x1
jax: 0.10.0
libtpu: 0.0.40
codegen_flags: <defaults>
</compile_context>

<pallas_src>
import functools

import jax
import jax.numpy as jnp
from jax.experimental import pallas as pl
from jax.experimental.pallas import tpu as pltpu


# ----------------------------- Pallas kernel ------------------------------

def _dilated_layer_kernel(dilation,
                          x_ref,
                          w1_ref, b1_ref,
                          wgf_ref, bgf_ref,
                          wp_ref, bp_ref,
                          out_res_ref, out_y_ref,
                          xp_ref, yp_ref):
    C, T = x_ref.shape
    d = dilation
    P = max(d, 1)

    x = x_ref[...]                                    # (C, T) f32
    xb = x.astype(jnp.bfloat16)

    # Zero-padded copy of x in VMEM: columns [0, P) and [P+T, P+T+P) are zero,
    # x lives at column offset P.  Every conv tap below is a static slice.
    xp_ref[:, pl.ds(0, P)] = jnp.zeros((C, P), jnp.bfloat16)
    xp_ref[:, pl.ds(P, T)] = xb
    xp_ref[:, pl.ds(P + T, P)] = jnp.zeros((C, P), jnp.bfloat16)

    # Stacked taps for the fused stage-1 matmul:
    #   rows = [ x[t-d] ; x[t-1] ; x[t] ; x[t+1] ; x[t+d] ]   -> (5C, T)
    xs = jnp.concatenate([
        xp_ref[:, pl.ds(P - d, T)],
        xp_ref[:, pl.ds(P - 1, T)],
        xb,
        xp_ref[:, pl.ds(P + 1, T)],
        xp_ref[:, pl.ds(P + d, T)],
    ], axis=0)

    # y = dil_conv(x) + local_conv(x) + direct_conv(x)   (one MXU matmul)
    y = jnp.dot(w1_ref[...], xs, preferred_element_type=jnp.float32)
    y = y + b1_ref[...]

    # Zero-padded copy of y for the +-1 taps of the gate/filter convs.
    yb = y.astype(jnp.bfloat16)
    yp_ref[:, pl.ds(0, 1)] = jnp.zeros((C, 1), jnp.bfloat16)
    yp_ref[:, pl.ds(1, T)] = yb
    yp_ref[:, pl.ds(1 + T, 1)] = jnp.zeros((C, 1), jnp.bfloat16)

    ys = jnp.concatenate([
        yp_ref[:, pl.ds(0, T)],      # y[t-1]
        yb,                          # y[t]
        yp_ref[:, pl.ds(2, T)],      # y[t+1]
    ], axis=0)                       # (3C, T)

    # gate and filter convs fused along the output axis (one MXU matmul).
    gf = jnp.dot(wgf_ref[...], ys, preferred_element_type=jnp.float32)
    gf = gf + bgf_ref[...]
    g = gf[:C, :]
    f = gf[C:, :]
    z = jax.nn.sigmoid(g) * jnp.tanh(f)

    # 1x1 projection.
    yo = jnp.dot(wp_ref[...], z.astype(jnp.bfloat16),
                 preferred_element_type=jnp.float32)
    yo = yo + bp_ref[...]

    out_res_ref[...] = (x + yo).astype(out_res_ref.dtype)
    out_y_ref[...] = yo.astype(out_y_ref.dtype)


# ------------------------------ JAX wrapper -------------------------------

def dilated_layer_forward(x, params, dilation):
    """x: (B, C, T) float32 in PyTorch NCL layout.  Returns (x + y, y)."""
    B, C, T = x.shape
    d = max(int(dilation), 1)

    def tap(w, k):   # (Cout, Cin, 3) -> (Cout, Cin) weight of tap k
        return w[:, :, k]

    # Fused stage-1 weight: column blocks match the (5C, T) stacked input
    #   [ x[t-d] | x[t-1] | x[t] | x[t+1] | x[t+d] ].
    w1 = jnp.concatenate([
        tap(params["dil_w"], 0),
        tap(params["loc_w"], 0),
        tap(params["dil_w"], 1) + tap(params["loc_w"], 1) + params["dir_w"][:, :, 0],
        tap(params["loc_w"], 2),
        tap(params["dil_w"], 2),
    ], axis=1).astype(jnp.bfloat16)                                   # (C, 5C)
    b1 = (params["dil_b"] + params["loc_b"] + params["dir_b"]).reshape(C, 1)

    # Fused gate/filter weight: output rows [gate ; filter], column blocks
    # match the (3C, T) stacked input [ y[t-1] | y[t] | y[t+1] ].
    wgf = jnp.concatenate([
        jnp.concatenate([tap(params["gate_w"], k) for k in range(3)], axis=1),
        jnp.concatenate([tap(params["filt_w"], k) for k in range(3)], axis=1),
    ], axis=0).astype(jnp.bfloat16)                                   # (2C, 3C)
    bgf = jnp.concatenate([params["gate_b"], params["filt_b"]]).reshape(2 * C, 1)

    wp = params["proj_w"][:, :, 0].astype(jnp.bfloat16)               # (C, C)
    bp = params["proj_b"].reshape(C, 1)

    args = (x, w1, b1, wgf, bgf, wp, bp)

    x_spec = pl.BlockSpec((pl.Squeezed(), C, T), lambda b: (b, 0, 0))

    def full_spec(a):
        nd = a.ndim
        return pl.BlockSpec(a.shape, lambda b: (0,) * nd)

    in_specs = [x_spec] + [full_spec(a) for a in args[1:]]
    out_specs = [x_spec, x_spec]

    kernel = functools.partial(_dilated_layer_kernel, d)

    # Advisory cost estimate so XLA schedules the surrounding ops sensibly.
    flops = 2 * B * T * (C * 5 * C + 2 * C * 3 * C + C * C)
    bytes_accessed = (3 * B * C * T * 4
                      + 2 * (w1.size + wgf.size + wp.size)
                      + 4 * (b1.size + bgf.size + bp.size))
    cost = pl.CostEstimate(flops=flops,
                           transcendentals=2 * B * T * C,
                           bytes_accessed=bytes_accessed)

    out_res, out_y = pl.pallas_call(
        kernel,
        out_shape=(jax.ShapeDtypeStruct((B, C, T), x.dtype),
                   jax.ShapeDtypeStruct((B, C, T), x.dtype)),
        grid_spec=pltpu.PrefetchScalarGridSpec(
            num_scalar_prefetch=0,
            grid=(B,),
            in_specs=in_specs,
            out_specs=out_specs,
            scratch_shapes=[pltpu.VMEM((C, T + 2 * d), jnp.bfloat16),
                            pltpu.VMEM((C, T + 2), jnp.bfloat16)]),
        compiler_params=pltpu.CompilerParams(
            dimension_semantics=("parallel",)),
        cost_estimate=cost,
    )(*args)

    return out_res, out_y


# --------------------------- pure-JAX reference ----------------------------

def _conv1d_ref(x, w, b, padding, dilation=1):
    out = jax.lax.conv_general_dilated(
        x, w, window_strides=(1,), padding=[(padding, padding)],
        rhs_dilation=(dilation,),
        dimension_numbers=("NCH", "OIH", "NCH"))
    return out + b[None, :, None]


def dilated_layer_ref(x, p, dilation):
    y = (_conv1d_ref(x, p["dil_w"], p["dil_b"], dilation, dilation)
         + _conv1d_ref(x, p["loc_w"], p["loc_b"], 1)
         + _conv1d_ref(x, p["dir_w"], p["dir_b"], 0))
    g = _conv1d_ref(y, p["gate_w"], p["gate_b"], 1)
    f = _conv1d_ref(y, p["filt_w"], p["filt_b"], 1)
    y = jax.nn.sigmoid(g) * jnp.tanh(f)
    y = _conv1d_ref(y, p["proj_w"], p["proj_b"], 0)
    return x + y, y


# ---------------------------------- main -----------------------------------

if __name__ == "__main__":
    B, HIDDEN, T = 2, 32, 64
    DILATION = 2

    key = jax.random.PRNGKey(0)
    keys = jax.random.split(key, 14)
    scale = 1.0 / jnp.sqrt(3.0 * HIDDEN)

    params = {
        "dil_w":  jax.random.normal(keys[1],  (HIDDEN, HIDDEN, 3), jnp.float32) * scale,
        "dil_b":  jax.random.normal(keys[2],  (HIDDEN,), jnp.float32) * 0.1,
        "loc_w":  jax.random.normal(keys[3],  (HIDDEN, HIDDEN, 3), jnp.float32) * scale,
        "loc_b":  jax.random.normal(keys[4],  (HIDDEN,), jnp.float32) * 0.1,
        "dir_w":  jax.random.normal(keys[5],  (HIDDEN, HIDDEN, 1), jnp.float32) * scale,
        "dir_b":  jax.random.normal(keys[6],  (HIDDEN,), jnp.float32) * 0.1,
        "gate_w": jax.random.normal(keys[7],  (HIDDEN, HIDDEN, 3), jnp.float32) * scale,
        "gate_b": jax.random.normal(keys[8],  (HIDDEN,), jnp.float32) * 0.1,
        "filt_w": jax.random.normal(keys[9],  (HIDDEN, HIDDEN, 3), jnp.float32) * scale,
        "filt_b": jax.random.normal(keys[10], (HIDDEN,), jnp.float32) * 0.1,
        "proj_w": jax.random.normal(keys[11], (HIDDEN, HIDDEN, 1), jnp.float32) * scale,
        "proj_b": jax.random.normal(keys[12], (HIDDEN,), jnp.float32) * 0.1,
    }

    x = jax.random.normal(keys[13], (B, HIDDEN, T), jnp.float32)

    out_res, out_y = dilated_layer_forward(x, params, DILATION)
    out_res = jax.block_until_ready(out_res)
    out_y = jax.block_until_ready(out_y)

    ref_res, ref_y = dilated_layer_ref(x, params, DILATION)

    assert out_res.shape == (B, HIDDEN, T) and out_y.shape == (B, HIDDEN, T)
    # bf16 MXU operands (f32 accumulation) -> looser tolerance vs f32 reference.
    assert jnp.allclose(out_res, ref_res, rtol=5e-2, atol=5e-2), "residual mismatch"
    assert jnp.allclose(out_y, ref_y, rtol=5e-2, atol=5e-2), "skip mismatch"

    print("KERNEL_OK")
</pallas_src>

<mosaic_0001>
module attributes {stable_mosaic.version = 11 : i64} {
  func.func @_dilated_layer_kernel(%arg0: i32, %arg1: memref<1x32x64xf32, #tpu.memory_space<vmem>>, %arg2: memref<32x160xbf16, #tpu.memory_space<vmem>>, %arg3: memref<32x1xf32, #tpu.memory_space<vmem>>, %arg4: memref<64x96xbf16, #tpu.memory_space<vmem>>, %arg5: memref<64x1xf32, #tpu.memory_space<vmem>>, %arg6: memref<32x32xbf16, #tpu.memory_space<vmem>>, %arg7: memref<32x1xf32, #tpu.memory_space<vmem>>, %arg8: memref<1x32x64xf32, #tpu.memory_space<vmem>>, %arg9: memref<1x32x64xf32, #tpu.memory_space<vmem>>, %arg10: memref<32x68xbf16, #tpu.memory_space<vmem>>, %arg11: memref<32x66xbf16, #tpu.memory_space<vmem>>) attributes {dimension_semantics = [#tpu.dimension_semantics<parallel>], iteration_bounds = array<i64: 2>, scalar_prefetch = 0 : i64, scratch_operands = 2 : i64, tpu.core_type = #tpu.core_type<tc>, window_params = [{transform_indices = @transform_0, window_bounds = array<i64: 1, 32, 64>}, {pipeline_mode = #tpu.pipeline_mode<synchronous>, transform_indices = @transform_1, window_bounds = array<i64: 32, 160>}, {pipeline_mode = #tpu.pipeline_mode<synchronous>, transform_indices = @transform_2, window_bounds = array<i64: 32, 1>}, {pipeline_mode = #tpu.pipeline_mode<synchronous>, transform_indices = @transform_3, window_bounds = array<i64: 64, 96>}, {pipeline_mode = #tpu.pipeline_mode<synchronous>, transform_indices = @transform_4, window_bounds = array<i64: 64, 1>}, {pipeline_mode = #tpu.pipeline_mode<synchronous>, transform_indices = @transform_5, window_bounds = array<i64: 32, 32>}, {pipeline_mode = #tpu.pipeline_mode<synchronous>, transform_indices = @transform_6, window_bounds = array<i64: 32, 1>}, {transform_indices = @transform_7, window_bounds = array<i64: 1, 32, 64>}, {transform_indices = @transform_8, window_bounds = array<i64: 1, 32, 64>}]} {
    %c0 = arith.constant 0 : index
    %c0_0 = arith.constant 0 : index
    %c0_1 = arith.constant 0 : index
    %0 = vector.load %arg1[%c0, %c0_0, %c0_1] : memref<1x32x64xf32, #tpu.memory_space<vmem>>, vector<1x32x64xf32>
    %1 = vector.shape_cast %0 : vector<1x32x64xf32> to vector<32x64xf32>
    %2 = arith.truncf %1 : vector<32x64xf32> to vector<32x64xbf16>
    %cst = arith.constant 0.000000e+00 : bf16
    %3 = vector.broadcast %cst : bf16 to vector<32x2xbf16>
    %c0_2 = arith.constant 0 : index
    %c0_3 = arith.constant 0 : index
    %4 = vector.load %arg10[%c0_2, %c0_3] : memref<32x68xbf16, #tpu.memory_space<vmem>>, vector<32x2xbf16>
    tpu.vector_store %arg10[%c0_2, %c0_3], %3 {strides = array<i32>} : memref<32x68xbf16, #tpu.memory_space<vmem>>, vector<32x2xbf16>,
    %c0_4 = arith.constant 0 : index
    %c2 = arith.constant 2 : index
    %5 = vector.load %arg10[%c0_4, %c2] : memref<32x68xbf16, #tpu.memory_space<vmem>>, vector<32x64xbf16>
    tpu.vector_store %arg10[%c0_4, %c2], %2 {strides = array<i32>} : memref<32x68xbf16, #tpu.memory_space<vmem>>, vector<32x64xbf16>,
    %cst_5 = arith.constant 0.000000e+00 : bf16
    %6 = vector.broadcast %cst_5 : bf16 to vector<32x2xbf16>
    %c0_6 = arith.constant 0 : index
    %c66 = arith.constant 66 : index
    %7 = vector.load %arg10[%c0_6, %c66] : memref<32x68xbf16, #tpu.memory_space<vmem>>, vector<32x2xbf16>
    tpu.vector_store %arg10[%c0_6, %c66], %6 {strides = array<i32>} : memref<32x68xbf16, #tpu.memory_space<vmem>>, vector<32x2xbf16>,
    %c0_7 = arith.constant 0 : index
    %c0_8 = arith.constant 0 : index
    %8 = vector.load %arg10[%c0_7, %c0_8] : memref<32x68xbf16, #tpu.memory_space<vmem>>, vector<32x64xbf16>
    %c0_9 = arith.constant 0 : index
    %c1 = arith.constant 1 : index
    %9 = vector.load %arg10[%c0_9, %c1] : memref<32x68xbf16, #tpu.memory_space<vmem>>, vector<32x64xbf16>
    %c0_10 = arith.constant 0 : index
    %c3 = arith.constant 3 : index
    %10 = vector.load %arg10[%c0_10, %c3] : memref<32x68xbf16, #tpu.memory_space<vmem>>, vector<32x64xbf16>
    %c0_11 = arith.constant 0 : index
    %c4 = arith.constant 4 : index
    %11 = vector.load %arg10[%c0_11, %c4] : memref<32x68xbf16, #tpu.memory_space<vmem>>, vector<32x64xbf16>
    %12 = tpu.concatenate %8, %9, %2, %10, %11 in 0 : vector<32x64xbf16>, vector<32x64xbf16>, vector<32x64xbf16>, vector<32x64xbf16>, vector<32x64xbf16> -> vector<160x64xbf16>
    %c0_12 = arith.constant 0 : index
    %c0_13 = arith.constant 0 : index
    %13 = vector.load %arg2[%c0_12, %c0_13] : memref<32x160xbf16, #tpu.memory_space<vmem>>, vector<32x160xbf16>
    %cst_14 = arith.constant dense<0.000000e+00> : vector<32x64xf32>
    %14 = tpu.matmul %13, %12, %cst_14 {dimension_numbers = #tpu.dot_dimension_numbers<[1], [0], [0], [1], [0, 0, 1, 1], [], []>} : vector<32x160xbf16>, vector<160x64xbf16>, vector<32x64xf32> -> vector<32x64xf32>
    %c0_15 = arith.constant 0 : index
    %c0_16 = arith.constant 0 : index
    %15 = vector.load %arg3[%c0_15, %c0_16] : memref<32x1xf32, #tpu.memory_space<vmem>>, vector<32x1xf32>
    %16 = vector.broadcast %15 : vector<32x1xf32> to vector<32x64xf32>
    %17 = arith.addf %14, %16 : vector<32x64xf32>
    %18 = arith.truncf %17 : vector<32x64xf32> to vector<32x64xbf16>
    %cst_17 = arith.constant 0.000000e+00 : bf16
    %19 = vector.broadcast %cst_17 : bf16 to vector<32x1xbf16>
    %c0_18 = arith.constant 0 : index
    %c0_19 = arith.constant 0 : index
    %20 = vector.load %arg11[%c0_18, %c0_19] : memref<32x66xbf16, #tpu.memory_space<vmem>>, vector<32x1xbf16>
    tpu.vector_store %arg11[%c0_18, %c0_19], %19 {strides = array<i32>} : memref<32x66xbf16, #tpu.memory_space<vmem>>, vector<32x1xbf16>,
    %c0_20 = arith.constant 0 : index
    %c1_21 = arith.constant 1 : index
    %21 = vector.load %arg11[%c0_20, %c1_21] : memref<32x66xbf16, #tpu.memory_space<vmem>>, vector<32x64xbf16>
    tpu.vector_store %arg11[%c0_20, %c1_21], %18 {strides = array<i32>} : memref<32x66xbf16, #tpu.memory_space<vmem>>, vector<32x64xbf16>,
    %cst_22 = arith.constant 0.000000e+00 : bf16
    %22 = vector.broadcast %cst_22 : bf16 to vector<32x1xbf16>
    %c0_23 = arith.constant 0 : index
    %c65 = arith.constant 65 : index
    %23 = vector.load %arg11[%c0_23, %c65] : memref<32x66xbf16, #tpu.memory_space<vmem>>, vector<32x1xbf16>
    tpu.vector_store %arg11[%c0_23, %c65], %22 {strides = array<i32>} : memref<32x66xbf16, #tpu.memory_space<vmem>>, vector<32x1xbf16>,
    %c0_24 = arith.constant 0 : index
    %c0_25 = arith.constant 0 : index
    %24 = vector.load %arg11[%c0_24, %c0_25] : memref<32x66xbf16, #tpu.memory_space<vmem>>, vector<32x64xbf16>
    %c0_26 = arith.constant 0 : index
    %c2_27 = arith.constant 2 : index
    %25 = vector.load %arg11[%c0_26, %c2_27] : memref<32x66xbf16, #tpu.memory_space<vmem>>, vector<32x64xbf16>
    %26 = tpu.concatenate %24, %18, %25 in 0 : vector<32x64xbf16>, vector<32x64xbf16>, vector<32x64xbf16> -> vector<96x64xbf16>
    %c0_28 = arith.constant 0 : index
    %c0_29 = arith.constant 0 : index
    %27 = vector.load %arg4[%c0_28, %c0_29] : memref<64x96xbf16, #tpu.memory_space<vmem>>, vector<64x96xbf16>
    %cst_30 = arith.constant dense<0.000000e+00> : vector<64x64xf32>
    %28 = tpu.matmul %27, %26, %cst_30 {dimension_numbers = #tpu.dot_dimension_numbers<[1], [0], [0], [1], [0, 0, 1, 1], [], []>} : vector<64x96xbf16>, vector<96x64xbf16>, vector<64x64xf32> -> vector<64x64xf32>
    %c0_31 = arith.constant 0 : index
    %c0_32 = arith.constant 0 : index
    %29 = vector.load %arg5[%c0_31, %c0_32] : memref<64x1xf32, #tpu.memory_space<vmem>>, vector<64x1xf32>
    %30 = vector.broadcast %29 : vector<64x1xf32> to vector<64x64xf32>
    %31 = arith.addf %28, %30 : vector<64x64xf32>
    %32 = vector.extract_strided_slice %31 {offsets = [0, 0], sizes = [32, 64], strides = [1, 1]} : vector<64x64xf32> to vector<32x64xf32>
    %33 = vector.extract_strided_slice %31 {offsets = [32, 0], sizes = [32, 64], strides = [1, 1]} : vector<64x64xf32> to vector<32x64xf32>
    %34 = arith.negf %32 : vector<32x64xf32>
    %35 = math.exp %34 : vector<32x64xf32>
    %cst_33 = arith.constant 1.000000e+00 : f32
    %36 = vector.broadcast %cst_33 : f32 to vector<32x64xf32>
    %37 = arith.addf %36, %35 : vector<32x64xf32>
    %38 = arith.divf %36, %37 : vector<32x64xf32>
    %39 = math.tanh %33 : vector<32x64xf32>
    %40 = arith.mulf %38, %39 : vector<32x64xf32>
    %c0_34 = arith.constant 0 : index
    %c0_35 = arith.constant 0 : index
    %41 = vector.load %arg6[%c0_34, %c0_35] : memref<32x32xbf16, #tpu.memory_space<vmem>>, vector<32x32xbf16>
    %42 = arith.truncf %40 : vector<32x64xf32> to vector<32x64xbf16>
    %cst_36 = arith.constant dense<0.000000e+00> : vector<32x64xf32>
    %43 = tpu.matmul %41, %42, %cst_36 {dimension_numbers = #tpu.dot_dimension_numbers<[1], [0], [0], [1], [0, 0, 1, 1], [], []>} : vector<32x32xbf16>, vector<32x64xbf16>, vector<32x64xf32> -> vector<32x64xf32>
    %c0_37 = arith.constant 0 : index
    %c0_38 = arith.constant 0 : index
    %44 = vector.load %arg7[%c0_37, %c0_38] : memref<32x1xf32, #tpu.memory_space<vmem>>, vector<32x1xf32>
    %45 = vector.broadcast %44 : vector<32x1xf32> to vector<32x64xf32>
    %46 = arith.addf %43, %45 : vector<32x64xf32>
    %47 = arith.addf %1, %46 : vector<32x64xf32>
    %c0_39 = arith.constant 0 : index
    %c0_40 = arith.constant 0 : index
    %c0_41 = arith.constant 0 : index
    %48 = vector.load %arg8[%c0_39, %c0_40, %c0_41] : memref<1x32x64xf32, #tpu.memory_space<vmem>>, vector<1x32x64xf32>
    %49 = vector.shape_cast %48 : vector<1x32x64xf32> to vector<32x64xf32>
    %50 = vector.shape_cast %47 : vector<32x64xf32> to vector<1x32x64xf32>
    tpu.vector_store %arg8[%c0_39, %c0_40, %c0_41], %50 {strides = array<i32>} : memref<1x32x64xf32, #tpu.memory_space<vmem>>, vector<1x32x64xf32>,
    %c0_42 = arith.constant 0 : index
    %c0_43 = arith.constant 0 : index
    %c0_44 = arith.constant 0 : index
    %51 = vector.load %arg9[%c0_42, %c0_43, %c0_44] : memref<1x32x64xf32, #tpu.memory_space<vmem>>, vector<1x32x64xf32>
    %52 = vector.shape_cast %51 : vector<1x32x64xf32> to vector<32x64xf32>
    %53 = vector.shape_cast %46 : vector<32x64xf32> to vector<1x32x64xf32>
    tpu.vector_store %arg9[%c0_42, %c0_43, %c0_44], %53 {strides = array<i32>} : memref<1x32x64xf32, #tpu.memory_space<vmem>>, vector<1x32x64xf32>,
    return
  }
  func.func @transform_0(%arg0: i32) -> (i32, i32, i32) {
    %c0_i32 = arith.constant 0 : i32
    %c0_i32_0 = arith.constant 0 : i32
    %c0_i32_1 = arith.constant 0 : i32
    return %arg0, %c0_i32, %c0_i32_0 : i32, i32, i32
  }
  func.func @transform_1(%arg0: i32) -> (i32, i32) {
    %c0_i32 = arith.constant 0 : i32
    %c0_i32_0 = arith.constant 0 : i32
    %c0_i32_1 = arith.constant 0 : i32
    return %c0_i32, %c0_i32_0 : i32, i32
  }
  func.func @transform_2(%arg0: i32) -> (i32, i32) {
    %c0_i32 = arith.constant 0 : i32
    %c0_i32_0 = arith.constant 0 : i32
    %c0_i32_1 = arith.constant 0 : i32
    return %c0_i32, %c0_i32_0 : i32, i32
  }
  func.func @transform_3(%arg0: i32) -> (i32, i32) {
    %c0_i32 = arith.constant 0 : i32
    %c0_i32_0 = arith.constant 0 : i32
    %c0_i32_1 = arith.constant 0 : i32
    return %c0_i32, %c0_i32_0 : i32, i32
  }
  func.func @transform_4(%arg0: i32) -> (i32, i32) {
    %c0_i32 = arith.constant 0 : i32
    %c0_i32_0 = arith.constant 0 : i32
    %c0_i32_1 = arith.constant 0 : i32
    return %c0_i32, %c0_i32_0 : i32, i32
  }
  func.func @transform_5(%arg0: i32) -> (i32, i32) {
    %c0_i32 = arith.constant 0 : i32
    %c0_i32_0 = arith.constant 0 : i32
    %c0_i32_1 = arith.constant 0 : i32
    return %c0_i32, %c0_i32_0 : i32, i32
  }
  func.func @transform_6(%arg0: i32) -> (i32, i32) {
    %c0_i32 = arith.constant 0 : i32
    %c0_i32_0 = arith.constant 0 : i32
    %c0_i32_1 = arith.constant 0 : i32
    return %c0_i32, %c0_i32_0 : i32, i32
  }
  func.func @transform_7(%arg0: i32) -> (i32, i32, i32) {
    %c0_i32 = arith.constant 0 : i32
    %c0_i32_0 = arith.constant 0 : i32
    %c0_i32_1 = arith.constant 0 : i32
    return %arg0, %c0_i32, %c0_i32_0 : i32, i32, i32
  }
  func.func @transform_8(%arg0: i32) -> (i32, i32, i32) {
    %c0_i32 = arith.constant 0 : i32
    %c0_i32_0 = arith.constant 0 : i32
    %c0_i32_1 = arith.constant 0 : i32
    return %arg0, %c0_i32, %c0_i32_0 : i32, i32, i32
  }
}

</mosaic_0001>

<llo_original>
// kernel: tpu_custom_call.1
$region0: #{tpu_custom_call.1}
  #allocation0 [shape = 'u32[]', space=smem, size = 0x4, offset = 0x4, fixed_abs, tag = 'smem constant byte address 0x4 - core index']
  #allocation1 [shape = 'u32[144,128]{1,0:T(1,128)}', space=vmem, size = 0x12000, scoped, tag = 'internal scratch']
  #allocation2 [shape = 'bf16[32,68]{1,0:T(16,128)(2,1)}', space=vmem, size = 0x2000, scoped, tag = 'scratch operand']
  #allocation3 [shape = 'bf16[32,66]{1,0:T(16,128)(2,1)}', space=vmem, size = 0x2000, scoped, tag = 'scratch operand']
  %s0 = inlined_call_operand.vmem [shape: f32[2,32,64], index: 0, kind: input, shape index: {}]
  %s1 = inlined_call_operand.vmem [shape: bf16[32,160], index: 1, kind: input, shape index: {}]
  %s2 = inlined_call_operand.vmem [shape: f32[32,1], index: 2, kind: input, shape index: {}]
  %s3 = inlined_call_operand.vmem [shape: bf16[64,96], index: 3, kind: input, shape index: {}]
  %s4 = inlined_call_operand.vmem [shape: f32[64,1], index: 4, kind: input, shape index: {}]
  %s5 = inlined_call_operand.vmem [shape: bf16[32,32], index: 5, kind: input, shape index: {}]
  %s6 = inlined_call_operand.vmem [shape: f32[32,1], index: 6, kind: input, shape index: {}]
  %s7 = inlined_call_operand.hbm [shape: f32[2,32,64], index: 7, kind: output, shape index: {0}]
  %s8 = inlined_call_operand.hbm [shape: f32[2,32,64], index: 8, kind: output, shape index: {1}]
  %9 = xla_tuple %s7, %s8
  %s10 = sld [smem:[#allocation0]]
  $region69: #{tpu_custom_call.1} parent=0
    _
  %s12 = ssub.s32 1, %s10
  %s13 = scalar_select 0, %s12, %s10
  $region1: #{tpu_custom_call.1} parent=0
    #allocation4 [shape = 'u8[32768]{0}', space=vmem, size = 0x8000, scoped, tag = 'output window, operand 0']
    #allocation5 [shape = 's32[2]{0}', space=sflag, size = 0x8, scoped, tag = 'scoped memory for tpu_custom_call.1']
    #allocation6 [shape = 'u8[32768]{0}', space=vmem, size = 0x8000, scoped, tag = 'output window, operand 1']
    #allocation7 [shape = 's32[2]{0}', space=sflag, size = 0x8, scoped, tag = 'scoped memory for tpu_custom_call.1']
    %14 = vsyncpa [#allocation5], 0
    %s15 = scalar_lea.sflag [#allocation5], 1
    %16 = vsyncpa %s15, 0
    %17 = vsyncpa [#allocation7], 0
    %s18 = scalar_lea.sflag [#allocation7], 1
    %19 = vsyncpa %s18, 0
    loop: start=0, step=1, limit=4
    $region2: #{tpu_custom_call.1} parent=1 // loop_pre_header
      _
    $region3: #{tpu_custom_call.1} parent=1 // loop_header
      %s21 = sphi 0, %s25
      %p22 = scmp.ge.s32.totalorder %s21, 4
      %s31 = sphi 0, %s33
      %s34 = sphi 0, %s31
      %s35 = sphi 0, %s34
      %s51 = sphi 0, %s35
      %s55 = sphi 0, %s55
      %s57 = sphi 0, %s55
      %s58 = sphi 0, %s57
      %s72 = sphi 0, %s58
      %s76 = sphi 0, %s76
      %s78 = sphi 0, %s76
      %s79 = sphi 0, %s78
      %s93 = sphi 0, %s79
      %s97 = sphi 0, %s97
      %s99 = sphi 0, %s97
      %s100 = sphi 0, %s99
      %s114 = sphi 0, %s100
      %s118 = sphi 0, %s118
      %s120 = sphi 0, %s118
      %s121 = sphi 0, %s120
      %s135 = sphi 0, %s121
      %s139 = sphi 0, %s139
      %s141 = sphi 0, %s139
      %s142 = sphi 0, %s141
      %s156 = sphi 0, %s142
      %s160 = sphi 0, %s160
      %s162 = sphi 0, %s160
      %s163 = sphi 0, %s162
      %s177 = sphi 0, %s163
      %s183 = sphi 0, %s185
      %s186 = sphi 0, %s183
      %s187 = sphi 0, %s186
      %s203 = sphi 0, %s187
      %s209 = sphi 0, %s211
      %s212 = sphi 0, %s209
      %s213 = sphi 0, %s212
      %s229 = sphi 0, %s213
    $region4: #{tpu_custom_call.1} parent=1 // loop_header_branch
      %24 = sbr.rel (%p22) target = $region8
    $region5: #{tpu_custom_call.1} parent=1 // loop_body
      %s26 = ssub.s32 %s21, 1
      %s27 = ssub.s32 %s21, 2
      %s28 = sadd.s32 %s21, 1
      %s29 = ssub.s32 %s21, %s28
      %p30 = scmp.eq.s32.totalorder %s29, 0
      %s32 = sadd.s32 %s31, 1
      %s33 = scalar_select %p30, %s31, %s32
      %p36 = pneg %p30
      %p37 = scmp.eq.s32.totalorder %s21, 1
      %p38 = por %p36, %p37
      %p39 = scmp.ne.s32.totalorder %s31, %s34
      %p40 = scmp.eq.s32.totalorder %s21, 0
      %p41 = por %p39, %p40
      %p42 = scmp.ne.s32.totalorder %s31, %s34
      %p43 = scmp.eq.s32.totalorder %s26, 1
      %p44 = por %p42, %p43
      %p45 = scmp.ne.s32.totalorder %s34, %s35
      %p46 = scmp.eq.s32.totalorder %s26, 0
      %p47 = por %p45, %p46
      %p48 = scmp.ne.s32.totalorder %s34, %s35
      %p49 = scmp.eq.s32.totalorder %s27, 1
      %p50 = por %p48, %p49
      %p52 = scmp.ne.s32.totalorder %s35, %s51
      %p53 = scmp.eq.s32.totalorder %s27, 0
      %p54 = por %p52, %p53
      %s56 = sadd.s32 %s55, 1
      %p59 = scmp.eq.s32.totalorder %s21, 1
      %p60 = scmp.ne.s32.totalorder %s55, %s57
      %p61 = scmp.eq.s32.totalorder %s21, 0
      %p62 = por %p60, %p61
      %p63 = scmp.ne.s32.totalorder %s55, %s57
      %p64 = scmp.eq.s32.totalorder %s26, 1
      %p65 = por %p63, %p64
      %p66 = scmp.ne.s32.totalorder %s57, %s58
      %p67 = scmp.eq.s32.totalorder %s26, 0
      %p68 = por %p66, %p67
      %p69 = scmp.ne.s32.totalorder %s57, %s58
      %p70 = scmp.eq.s32.totalorder %s27, 1
      %p71 = por %p69, %p70
      %p73 = scmp.ne.s32.totalorder %s58, %s72
      %p74 = scmp.eq.s32.totalorder %s27, 0
      %p75 = por %p73, %p74
      %s77 = sadd.s32 %s76, 1
      %p80 = scmp.eq.s32.totalorder %s21, 1
      %p81 = scmp.ne.s32.totalorder %s76, %s78
      %p82 = scmp.eq.s32.totalorder %s21, 0
      %p83 = por %p81, %p82
      %p84 = scmp.ne.s32.totalorder %s76, %s78
      %p85 = scmp.eq.s32.totalorder %s26, 1
      %p86 = por %p84, %p85
      %p87 = scmp.ne.s32.totalorder %s78, %s79
      %p88 = scmp.eq.s32.totalorder %s26, 0
      %p89 = por %p87, %p88
      %p90 = scmp.ne.s32.totalorder %s78, %s79
      %p91 = scmp.eq.s32.totalorder %s27, 1
      %p92 = por %p90, %p91
      %p94 = scmp.ne.s32.totalorder %s79, %s93
      %p95 = scmp.eq.s32.totalorder %s27, 0
      %p96 = por %p94, %p95
      %s98 = sadd.s32 %s97, 1
      %p101 = scmp.eq.s32.totalorder %s21, 1
      %p102 = scmp.ne.s32.totalorder %s97, %s99
      %p103 = scmp.eq.s32.totalorder %s21, 0
      %p104 = por %p102, %p103
      %p105 = scmp.ne.s32.totalorder %s97, %s99
      %p106 = scmp.eq.s32.totalorder %s26, 1
      %p107 = por %p105, %p106
      %p108 = scmp.ne.s32.totalorder %s99, %s100
      %p109 = scmp.eq.s32.totalorder %s26, 0
      %p110 = por %p108, %p109
      %p111 = scmp.ne.s32.totalorder %s99, %s100
      %p112 = scmp.eq.s32.totalorder %s27, 1
      %p113 = por %p111, %p112
      %p115 = scmp.ne.s32.totalorder %s100, %s114
      %p116 = scmp.eq.s32.totalorder %s27, 0
      %p117 = por %p115, %p116
      %s119 = sadd.s32 %s118, 1
      %p122 = scmp.eq.s32.totalorder %s21, 1
      %p123 = scmp.ne.s32.totalorder %s118, %s120
      %p124 = scmp.eq.s32.totalorder %s21, 0
      %p125 = por %p123, %p124
      %p126 = scmp.ne.s32.totalorder %s118, %s120
      %p127 = scmp.eq.s32.totalorder %s26, 1
      %p128 = por %p126, %p127
      %p129 = scmp.ne.s32.totalorder %s120, %s121
      %p130 = scmp.eq.s32.totalorder %s26, 0
      %p131 = por %p129, %p130
      %p132 = scmp.ne.s32.totalorder %s120, %s121
      %p133 = scmp.eq.s32.totalorder %s27, 1
      %p134 = por %p132, %p133
      %p136 = scmp.ne.s32.totalorder %s121, %s135
      %p137 = scmp.eq.s32.totalorder %s27, 0
      %p138 = por %p136, %p137
      %s140 = sadd.s32 %s139, 1
      %p143 = scmp.eq.s32.totalorder %s21, 1
      %p144 = scmp.ne.s32.totalorder %s139, %s141
      %p145 = scmp.eq.s32.totalorder %s21, 0
      %p146 = por %p144, %p145
      %p147 = scmp.ne.s32.totalorder %s139, %s141
      %p148 = scmp.eq.s32.totalorder %s26, 1
      %p149 = por %p147, %p148
      %p150 = scmp.ne.s32.totalorder %s141, %s142
      %p151 = scmp.eq.s32.totalorder %s26, 0
      %p152 = por %p150, %p151
      %p153 = scmp.ne.s32.totalorder %s141, %s142
      %p154 = scmp.eq.s32.totalorder %s27, 1
      %p155 = por %p153, %p154
      %p157 = scmp.ne.s32.totalorder %s142, %s156
      %p158 = scmp.eq.s32.totalorder %s27, 0
      %p159 = por %p157, %p158
      %s161 = sadd.s32 %s160, 1
      %p164 = scmp.eq.s32.totalorder %s21, 1
      %p165 = scmp.ne.s32.totalorder %s160, %s162
      %p166 = scmp.eq.s32.totalorder %s21, 0
      %p167 = por %p165, %p166
      %p168 = scmp.ne.s32.totalorder %s160, %s162
      %p169 = scmp.eq.s32.totalorder %s26, 1
      %p170 = por %p168, %p169
      %p171 = scmp.ne.s32.totalorder %s162, %s163
      %p172 = scmp.eq.s32.totalorder %s26, 0
      %p173 = por %p171, %p172
      %p174 = scmp.ne.s32.totalorder %s162, %s163
      %p175 = scmp.eq.s32.totalorder %s27, 1
      %p176 = por %p174, %p175
      %p178 = scmp.ne.s32.totalorder %s163, %s177
      %p179 = scmp.eq.s32.totalorder %s27, 0
      %p180 = por %p178, %p179
      %s181 = ssub.s32 %s21, %s28
      %p182 = scmp.eq.s32.totalorder %s181, 0
      %s184 = sadd.s32 %s183, 1
      %s185 = scalar_select %p182, %s183, %s184
      %p188 = pneg %p182
      %p189 = scmp.eq.s32.totalorder %s21, 1
      %p190 = por %p188, %p189
      %p191 = scmp.ne.s32.totalorder %s183, %s186
      %p192 = scmp.eq.s32.totalorder %s21, 0
      %p193 = por %p191, %p192
      %p194 = scmp.ne.s32.totalorder %s183, %s186
      %p195 = scmp.eq.s32.totalorder %s26, 1
      %p196 = por %p194, %p195
      %p197 = scmp.ne.s32.totalorder %s186, %s187
      %p198 = scmp.eq.s32.totalorder %s26, 0
      %p199 = por %p197, %p198
      %p200 = scmp.ne.s32.totalorder %s186, %s187
      %p201 = scmp.eq.s32.totalorder %s27, 1
      %p202 = por %p200, %p201
      %p204 = scmp.ne.s32.totalorder %s187, %s203
      %p205 = scmp.eq.s32.totalorder %s27, 0
      %p206 = por %p204, %p205
      %s207 = ssub.s32 %s21, %s28
      %p208 = scmp.eq.s32.totalorder %s207, 0
      %s210 = sadd.s32 %s209, 1
      %s211 = scalar_select %p208, %s209, %s210
      %p214 = pneg %p208
      %p215 = scmp.eq.s32.totalorder %s21, 1
      %p216 = por %p214, %p215
      %p217 = scmp.ne.s32.totalorder %s209, %s212
      %p218 = scmp.eq.s32.totalorder %s21, 0
      %p219 = por %p217, %p218
      %p220 = scmp.ne.s32.totalorder %s209, %s212
      %p221 = scmp.eq.s32.totalorder %s26, 1
      %p222 = por %p220, %p221
      %p223 = scmp.ne.s32.totalorder %s212, %s213
      %p224 = scmp.eq.s32.totalorder %s26, 0
      %p225 = por %p223, %p224
      %p226 = scmp.ne.s32.totalorder %s212, %s213
      %p227 = scmp.eq.s32.totalorder %s27, 1
      %p228 = por %p226, %p227
      %p230 = scmp.ne.s32.totalorder %s213, %s229
      %p231 = scmp.eq.s32.totalorder %s27, 0
      %p232 = por %p230, %p231
      %p233 = scmp.le.s32.totalorder 1, %s21
      %p234 = scmp.lt.s32.totalorder %s21, 3
      %p235 = pnand %p233, %p234
      %p236 = pneg %p235
      // Predicated region
      $region9: #{tpu_custom_call.1} parent=5 // pred_check
        _
      $region10: #{tpu_custom_call.1} parent=5 // pred_check_branch
        %238 = sbr.rel (%p235) target = $region12
      $region11: #{tpu_custom_call.1} parent=5 // pred_region
        %s239 = ssub.s32 %s21, 1
        // Predicated region
        $region13: #{tpu_custom_call.1} parent=11 // pred_check
          %p240 = pneg %p68
        $region14: #{tpu_custom_call.1} parent=11 // pred_check_branch
          %242 = sbr.rel (%p240) target = $region16
        $region15: #{tpu_custom_call.1} parent=11 // pred_region
          _
        $region16: #{tpu_custom_call.1} parent=11 // pred_fallthru
          _
        // Predicated region
        $region17: #{tpu_custom_call.1} parent=11 // pred_check
          %p243 = pneg %p89
        $region18: #{tpu_custom_call.1} parent=11 // pred_check_branch
          %245 = sbr.rel (%p243) target = $region20
        $region19: #{tpu_custom_call.1} parent=11 // pred_region
          _
        $region20: #{tpu_custom_call.1} parent=11 // pred_fallthru
          _
        // Predicated region
        $region21: #{tpu_custom_call.1} parent=11 // pred_check
          %p246 = pneg %p110
        $region22: #{tpu_custom_call.1} parent=11 // pred_check_branch
          %248 = sbr.rel (%p246) target = $region24
        $region23: #{tpu_custom_call.1} parent=11 // pred_region
          _
        $region24: #{tpu_custom_call.1} parent=11 // pred_fallthru
          _
        // Predicated region
        $region25: #{tpu_custom_call.1} parent=11 // pred_check
          %p249 = pneg %p131
        $region26: #{tpu_custom_call.1} parent=11 // pred_check_branch
          %251 = sbr.rel (%p249) target = $region28
        $region27: #{tpu_custom_call.1} parent=11 // pred_region
          _
        $region28: #{tpu_custom_call.1} parent=11 // pred_fallthru
          _
        // Predicated region
        $region29: #{tpu_custom_call.1} parent=11 // pred_check
          %p252 = pneg %p152
        $region30: #{tpu_custom_call.1} parent=11 // pred_check_branch
          %254 = sbr.rel (%p252) target = $region32
        $region31: #{tpu_custom_call.1} parent=11 // pred_region
          _
        $region32: #{tpu_custom_call.1} parent=11 // pred_fallthru
          _
        // Predicated region
        $region33: #{tpu_custom_call.1} parent=11 // pred_check
          %p255 = pneg %p173
        $region34: #{tpu_custom_call.1} parent=11 // pred_check_branch
          %257 = sbr.rel (%p255) target = $region36
        $region35: #{tpu_custom_call.1} parent=11 // pred_region
          _
        $region36: #{tpu_custom_call.1} parent=11 // pred_fallthru
          _
      $region12: #{tpu_custom_call.1} parent=5 // pred_fallthru
        _
      %p258 = scmp.lt.s32.totalorder %s21, 2
      // Predicated region
      $region37: #{tpu_custom_call.1} parent=5 // pred_check
        %p259 = pneg %p258
      $region38: #{tpu_custom_call.1} parent=5 // pred_check_branch
        %261 = sbr.rel (%p259) target = $region40
      $region39: #{tpu_custom_call.1} parent=5 // pred_region
        // Predicated region
        $region41: #{tpu_custom_call.1} parent=39 // pred_check
          %p262 = pneg %p41
        $region42: #{tpu_custom_call.1} parent=39 // pred_check_branch
          %264 = sbr.rel (%p262) target = $region44
        $region43: #{tpu_custom_call.1} parent=39 // pred_region
          %p265 = scmp.lt.s32.totalorder %s21, 1
          %s266 = scalar_select %p265, %s21, 1
          %s267 = smul.addr %s266, 4
          %s268 = smul.addr %s267, 8
          %s269 = scalar_lea.vmem %s0, %s268
        $region44: #{tpu_custom_call.1} parent=39 // pred_fallthru
          _
      $region40: #{tpu_custom_call.1} parent=5 // pred_fallthru
        _
      %p270 = scmp.le.s32.totalorder 1, %s21
      %p271 = scmp.lt.s32.totalorder %s21, 3
      %p272 = pnand %p270, %p271
      %p273 = pneg %p272
      // Predicated region
      $region45: #{tpu_custom_call.1} parent=5 // pred_check
        _
      $region46: #{tpu_custom_call.1} parent=5 // pred_check_branch
        %275 = sbr.rel (%p272) target = $region48
      $region47: #{tpu_custom_call.1} parent=5 // pred_region
        %s276 = ssub.s32 %s21, 1
        %p277 = scmp.lt.s32.totalorder %s26, 1
        %s278 = scalar_select %p277, %s26, 1
        %s279 = smul.addr %s278, 4
        %s280 = smul.addr %s279, 8
        %s281 = scalar_lea.vmem %s0, %s280
        %p282 = pneg %p47
        %p283 = pneg %p44
        %p284 = pneg %p68
        %p285 = pneg %p65
        %p286 = pneg %p89
        %p287 = pneg %p86
        %p288 = pneg %p110
        %p289 = pneg %p107
        %p290 = pneg %p131
        %p291 = pneg %p128
        %p292 = pneg %p152
        %p293 = pneg %p149
        %p294 = pneg %p173
        %p295 = pneg %p170
        %p296 = pneg %p199
        %p297 = pneg %p196
        %s298 = sand.u32 %s186, 1
        %s299 = scalar_lea.sflag [#allocation5], %s298
        %s300 = sand.u32 %s186, 1
        %s301 = smul.addr %s300, 32
        %s302 = scalar_lea.vmem [#allocation4], %s301
        %p303 = pneg %p225
        %p304 = pneg %p222
        %s305 = sand.u32 %s212, 1
        %s306 = scalar_lea.sflag [#allocation7], %s305
        %s307 = sand.u32 %s212, 1
        %s308 = smul.addr %s307, 32
        %s309 = scalar_lea.vmem [#allocation6], %s308
        %p310 = scmp.lt.s32.totalorder %s26, 1
        %s311 = scalar_select %p310, %s26, 1
        %s312 = smul.addr %s311, 4
        %s313 = smul.addr %s312, 8
        %s314 = scalar_lea.vmem %s0, %s313
        %v316 = vld [vmem:[%s314] sm:$0xff]
        %v317 = vld [vmem:[%s314 + $0x8] sm:$0xff]
        %v318 = vld [vmem:[%s314 + $0x10] sm:$0xff]
        %v319 = vld [vmem:[%s314 + $0x18] sm:$0xff]
        %v320 = vpack.c.bf16 %v317, %v316
        %v321 = vpack.c.bf16 %v319, %v318
        %vm322 = vcmask 15360
        %323 = vst.msk [vmem:[#allocation2] sm:$0xff] %vm322, 0
        %324 = vst.msk [vmem:[#allocation2 + $0x8] sm:$0xff] %vm322, 0
        %327 = vrot.lane.b32.xlu0 %v320, 2
        %v328 = vpop.permute.xlu0 %327
        %329 = vrot.lane.b32.xlu0 %v321, 2
        %v330 = vpop.permute.xlu0 %329
        %vm333 = vcmask 539664
        %334 = vst.msk [vmem:[#allocation2] sm:$0xff] %vm333, %v328
        %335 = vst.msk [vmem:[#allocation2 + $0x8] sm:$0xff] %vm333, %v330
        %vm336 = vcmask 556560
        %337 = vst.msk [vmem:[#allocation2] sm:$0xff] %vm336, 0
        %338 = vst.msk [vmem:[#allocation2 + $0x8] sm:$0xff] %vm336, 0
        %v339 = vld [vmem:[#allocation2] sm:$0xff]
        %v340 = vld [vmem:[#allocation2 + $0x8] sm:$0xff]
        %343 = vrot.lane.b32.xlu0 %v339, 127
        %v344 = vpop.permute.xlu0 %343
        %345 = vrot.lane.b32.xlu0 %v340, 127
        %v346 = vpop.permute.xlu0 %345
        %349 = vrot.lane.b32.xlu0 %v339, 125
        %v350 = vpop.permute.xlu0 %349
        %351 = vrot.lane.b32.xlu0 %v340, 125
        %v352 = vpop.permute.xlu0 %351
        %355 = vrot.lane.b32.xlu0 %v339, 124
        %v356 = vpop.permute.xlu0 %355
        %357 = vrot.lane.b32.xlu0 %v340, 124
        %v358 = vpop.permute.xlu0 %357
        %v361 = vld [vmem:[%s1] sm:$0xff]
        %v362 = vld [vmem:[%s1 + $0x8] sm:$0xff]
        %v363 = vld [vmem:[%s1 + $0x10] sm:$0xff]
        %v364 = vld [vmem:[%s1 + $0x18] sm:$0xff]
        %v365 = vld [vmem:[%s2] sm:$0xff]
        %v366 = vld [vmem:[%s2 + $0x8] sm:$0xff]
        %v367 = vld [vmem:[%s2 + $0x10] sm:$0xff]
        %v368 = vld [vmem:[%s2 + $0x18] sm:$0xff]
        %370 = vset.pattern.permute.xlu0 0
        %371 = vperm.xlu0 %370, %v365
        %v372 = vpop.permute.xlu0 %371
        %375 = vset.pattern.permute.xlu0 0
        %376 = vperm.xlu0 %375, %v366
        %v377 = vpop.permute.xlu0 %376
        %380 = vset.pattern.permute.xlu0 0
        %381 = vperm.xlu0 %380, %v367
        %v382 = vpop.permute.xlu0 %381
        %385 = vset.pattern.permute.xlu0 0
        %386 = vperm.xlu0 %385, %v368
        %v387 = vpop.permute.xlu0 %386
        %v393 = vunpack.c.l.b16 %v361
        %v394 = vunpack.c.h.b16 %v361
        %v395 = vunpack.c.l.b16 %v362
        %v396 = vunpack.c.h.b16 %v362
        %v397 = vunpack.c.l.b16 %v363
        %v398 = vunpack.c.h.b16 %v363
        %v399 = vunpack.c.l.b16 %v364
        %v400 = vunpack.c.h.b16 %v364
        %v401 = vpack.c.b16 %v395, %v393
        %v402 = vpack.c.b16 %v396, %v394
        %v403 = vpack.c.b16 %v399, %v397
        %v404 = vpack.c.b16 %v400, %v398
        %vm407 = vcmask 261120
        %v409 = vsel %vm407, %v402, 0
        %v412 = vsel %vm407, %v404, 0
        %414 = vmatprep.subr.bf16.mxu0 0
        %415 = vmatpush1.bf16.msra.mxu0 %v339
        %416 = vmatprep.subr.bf16.mxu0 0
        %417 = vmatpush1.bf16.msra.mxu0 %v340
        %418 = vmatprep.subr.bf16.mxu0 0
        %419 = vmatpush1.bf16.msra.mxu0 %v344
        %420 = vmatprep.subr.bf16.mxu0 0
        %421 = vmatpush1.bf16.msra.mxu0 %v346
        %422 = vmatprep.subr.bf16.mxu0 0
        %423 = vmatpush1.bf16.msra.mxu0 %v320
        %424 = vmatprep.subr.bf16.mxu0 0
        %425 = vmatpush1.bf16.msra.mxu0 %v321
        %426 = vmatprep.subr.bf16.mxu0 0
        %427 = vmatpush1.bf16.msra.mxu0 %v350
        %428 = vmatprep.subr.bf16.mxu0 0
        %429 = vmatpush1.bf16.msra.mxu0 %v352
        %430 = vmatprep.subr.bf16.mxu0 0
        %431 = vmatpush1.bf16.msra.mxu0 %v356
        %432 = vmatprep.subr.bf16.mxu0 0
        %433 = vmatpush1.bf16.msra.mxu0 %v358
        %434 = vmatprep.subr.bf16.mxu0 0
        %435 = vmatpush1.bf16.msra.mxu0 0
        %436 = vmatprep.subr.bf16.mxu0 0
        %437 = vmatpush1.bf16.msra.mxu0 0
        %438 = vmatprep.subr.bf16.mxu0 0
        %439 = vmatpush1.bf16.msra.mxu0 0
        %440 = vmatprep.subr.bf16.mxu0 0
        %441 = vmatpush1.bf16.msra.mxu0 0
        %442 = vmatprep.subr.bf16.mxu0 0
        %443 = vmatpush1.bf16.msra.mxu0 0
        %444 = vmatprep.subr.bf16.mxu0 0
        %445 = vmatpush1.bf16.msra.mxu0 0
        %446 = vmatprep.mubr.bf16.mxu0 %v409
        %447 = vmatmul.mubr.bf16.gmra.mrb[0].mxu0 %v401
        %v448 = vpop.f32.mrb[0].mxu0
        %v449 = vadd.f32 %v372, %v448
        %v450 = vpop.f32.mrb[0].mxu0
        %v451 = vpop.f32.mrb[0].mxu0
        %v452 = vadd.f32 %v377, %v451
        %v453 = vpop.f32.mrb[0].mxu0
        %454 = vmatprep.mubr.bf16.mxu0 %v412
        %455 = vmatmul.mubr.bf16.gmra.mrb[0].mxu0 %v403
        %v456 = vpop.f32.mrb[0].mxu0
        %v457 = vadd.f32 %v382, %v456
        %v458 = vpop.f32.mrb[0].mxu0
        %v459 = vpop.f32.mrb[0].mxu0
        %v460 = vadd.f32 %v387, %v459
        %v461 = vpop.f32.mrb[0].mxu0
        %462 = vdwg.mxu0
        %v463 = vpack.c.bf16 %v452, %v449
        %v464 = vpack.c.bf16 %v460, %v457
        %vm465 = vcmask 7168
        %466 = vst.msk [vmem:[#allocation3] sm:$0xff] %vm465, 0
        %467 = vst.msk [vmem:[#allocation3 + $0x8] sm:$0xff] %vm465, 0
        %470 = vrot.lane.b32.xlu0 %v463, 1
        %v471 = vpop.permute.xlu0 %470
        %472 = vrot.lane.b32.xlu0 %v464, 1
        %v473 = vpop.permute.xlu0 %472
        %vm476 = vcmask 531464
        %477 = vst.msk [vmem:[#allocation3] sm:$0xff] %vm476, %v471
        %478 = vst.msk [vmem:[#allocation3 + $0x8] sm:$0xff] %vm476, %v473
        %vm479 = vcmask 540168
        %480 = vst.msk [vmem:[#allocation3] sm:$0xff] %vm479, 0
        %481 = vst.msk [vmem:[#allocation3 + $0x8] sm:$0xff] %vm479, 0
        %v482 = vld [vmem:[#allocation3] sm:$0xff]
        %v483 = vld [vmem:[#allocation3 + $0x8] sm:$0xff]
        %486 = vrot.lane.b32.xlu0 %v482, 126
        %v487 = vpop.permute.xlu0 %486
        %488 = vrot.lane.b32.xlu0 %v483, 126
        %v489 = vpop.permute.xlu0 %488
        %v492 = vld [vmem:[%s3] sm:$0xf]
        %v493 = vld [vmem:[%s3 + $0x4] sm:$0xf]
        %v494 = vld [vmem:[%s3 + $0x8] sm:$0xf]
        %v495 = vld [vmem:[%s3 + $0xc] sm:$0xf]
        %v496 = vld [vmem:[%s3 + $0x10] sm:$0xf]
        %v497 = vld [vmem:[%s3 + $0x14] sm:$0xf]
        %v498 = vld [vmem:[%s3 + $0x18] sm:$0xf]
        %v499 = vld [vmem:[%s3 + $0x1c] sm:$0xf]
        %v500 = vld [vmem:[%s4] sm:$0xff]
        %v501 = vld [vmem:[%s4 + $0x8] sm:$0xff]
        %v502 = vld [vmem:[%s4 + $0x10] sm:$0xff]
        %v503 = vld [vmem:[%s4 + $0x18] sm:$0xff]
        %v504 = vld [vmem:[%s4 + $0x20] sm:$0xff]
        %v505 = vld [vmem:[%s4 + $0x28] sm:$0xff]
        %v506 = vld [vmem:[%s4 + $0x30] sm:$0xff]
        %v507 = vld [vmem:[%s4 + $0x38] sm:$0xff]
        %509 = vset.pattern.permute.xlu0 0
        %510 = vperm.xlu0 %509, %v500
        %v511 = vpop.permute.xlu0 %510
        %514 = vset.pattern.permute.xlu0 0
        %515 = vperm.xlu0 %514, %v501
        %v516 = vpop.permute.xlu0 %515
        %519 = vset.pattern.permute.xlu0 0
        %520 = vperm.xlu0 %519, %v502
        %v521 = vpop.permute.xlu0 %520
        %524 = vset.pattern.permute.xlu0 0
        %525 = vperm.xlu0 %524, %v503
        %v526 = vpop.permute.xlu0 %525
        %529 = vset.pattern.permute.xlu0 0
        %530 = vperm.xlu0 %529, %v504
        %v531 = vpop.permute.xlu0 %530
        %534 = vset.pattern.permute.xlu0 0
        %535 = vperm.xlu0 %534, %v505
        %v536 = vpop.permute.xlu0 %535
        %539 = vset.pattern.permute.xlu0 0
        %540 = vperm.xlu0 %539, %v506
        %v541 = vpop.permute.xlu0 %540
        %544 = vset.pattern.permute.xlu0 0
        %545 = vperm.xlu0 %544, %v507
        %v546 = vpop.permute.xlu0 %545
        %v556 = vunpack.c.l.b16 %v492
        %v557 = vunpack.c.l.b16 %v493
        %v558 = vunpack.c.l.b16 %v494
        %v559 = vunpack.c.l.b16 %v495
        %v560 = vunpack.c.l.b16 %v496
        %v561 = vunpack.c.l.b16 %v497
        %v562 = vunpack.c.l.b16 %v498
        %v563 = vunpack.c.l.b16 %v499
        %v564 = vpack.c.b16 %v557, %v556
        %v565 = vpack.c.b16 %v559, %v558
        %v566 = vpack.c.b16 %v561, %v560
        %v567 = vpack.c.b16 %v563, %v562
        %vm568 = vcmask 785408
        %v570 = vsel %vm568, %v564, 0
        %v573 = vsel %vm568, %v565, 0
        %v576 = vsel %vm568, %v566, 0
        %v579 = vsel %vm568, %v567, 0
        %581 = vmatprep.subr.bf16.mxu0 0
        %582 = vmatpush1.bf16.msra.mxu0 %v482
        %583 = vmatprep.subr.bf16.mxu0 0
        %584 = vmatpush1.bf16.msra.mxu0 %v483
        %585 = vmatprep.subr.bf16.mxu0 0
        %586 = vmatpush1.bf16.msra.mxu0 %v463
        %587 = vmatprep.subr.bf16.mxu0 0
        %588 = vmatpush1.bf16.msra.mxu0 %v464
        %589 = vmatprep.subr.bf16.mxu0 0
        %590 = vmatpush1.bf16.msra.mxu0 %v487
        %591 = vmatprep.subr.bf16.mxu0 0
        %592 = vmatpush1.bf16.msra.mxu0 %v489
        %593 = vmatprep.subr.bf16.mxu0 0
        %594 = vmatpush1.bf16.msra.mxu0 0
        %595 = vmatprep.subr.bf16.mxu0 0
        %596 = vmatpush1.bf16.msra.mxu0 0
        %597 = vmatprep.subr.bf16.mxu0 0
        %598 = vmatpush1.bf16.msra.mxu0 0
        %599 = vmatprep.subr.bf16.mxu0 0
        %600 = vmatpush1.bf16.msra.mxu0 0
        %601 = vmatprep.subr.bf16.mxu0 0
        %602 = vmatpush1.bf16.msra.mxu0 0
        %603 = vmatprep.subr.bf16.mxu0 0
        %604 = vmatpush1.bf16.msra.mxu0 0
        %605 = vmatprep.subr.bf16.mxu0 0
        %606 = vmatpush1.bf16.msra.mxu0 0
        %607 = vmatprep.subr.bf16.mxu0 0
        %608 = vmatpush1.bf16.msra.mxu0 0
        %609 = vmatprep.subr.bf16.mxu0 0
        %610 = vmatpush1.bf16.msra.mxu0 0
        %611 = vmatprep.subr.bf16.mxu0 0
        %612 = vmatpush1.bf16.msra.mxu0 0
        %613 = vmatprep.mubr.bf16.mxu0 0
        %614 = vmatmul.mubr.bf16.gmra.mrb[0].mxu0 %v570
        %v615 = vpop.f32.mrb[0].mxu0
        %v616 = vadd.f32 %v511, %v615
        %v617 = vpop.f32.mrb[0].mxu0
        %v618 = vpop.f32.mrb[0].mxu0
        %v619 = vadd.f32 %v516, %v618
        %v620 = vpop.f32.mrb[0].mxu0
        %621 = vmatprep.mubr.bf16.mxu0 0
        %622 = vmatmul.mubr.bf16.gmra.mrb[0].mxu0 %v573
        %v623 = vpop.f32.mrb[0].mxu0
        %v624 = vadd.f32 %v521, %v623
        %v625 = vpop.f32.mrb[0].mxu0
        %v626 = vpop.f32.mrb[0].mxu0
        %v627 = vadd.f32 %v526, %v626
        %v628 = vpop.f32.mrb[0].mxu0
        %629 = vmatprep.mubr.bf16.mxu0 0
        %630 = vmatmul.mubr.bf16.gmra.mrb[0].mxu0 %v576
        %v631 = vpop.f32.mrb[0].mxu0
        %v632 = vadd.f32 %v531, %v631
        %v633 = vpop.f32.mrb[0].mxu0
        %v634 = vpop.f32.mrb[0].mxu0
        %v635 = vadd.f32 %v536, %v634
        %v636 = vpop.f32.mrb[0].mxu0
        %637 = vmatprep.mubr.bf16.mxu0 0
        %638 = vmatmul.mubr.bf16.gmra.mrb[0].mxu0 %v579
        %v639 = vpop.f32.mrb[0].mxu0
        %v640 = vadd.f32 %v541, %v639
        %v641 = vpop.f32.mrb[0].mxu0
        %v642 = vpop.f32.mrb[0].mxu0
        %v643 = vadd.f32 %v546, %v642
        %v644 = vpop.f32.mrb[0].mxu0
        %645 = vdwg.mxu0
        %v646 = vxor.u32 %v616, 2147483648
        %v647 = vxor.u32 %v619, 2147483648
        %v648 = vxor.u32 %v624, 2147483648
        %v649 = vxor.u32 %v627, 2147483648
        %v650 = vmul.f32 %v646, 1.442695
        %v651 = vpow.pop %v650
        %v652 = vmul.f32 %v647, 1.442695
        %v653 = vpow.pop %v652
        %v654 = vmul.f32 %v648, 1.442695
        %v655 = vpow.pop %v654
        %v656 = vmul.f32 %v649, 1.442695
        %v657 = vpow.pop %v656
        %v658 = vadd.f32 %v651, 1.0
        %v659 = vadd.f32 %v653, 1.0
        %v660 = vadd.f32 %v655, 1.0
        %v661 = vadd.f32 %v657, 1.0
        %v662 = vrcp.pop %v658
        %v663 = vmul.f32 1.0, %v662
        %v664 = vrcp.pop %v659
        %v665 = vmul.f32 1.0, %v664
        %v666 = vrcp.pop %v660
        %v667 = vmul.f32 1.0, %v666
        %v668 = vrcp.pop %v661
        %v669 = vmul.f32 1.0, %v668
        %v670 = vtanh.pop %v632
        %v671 = vtanh.pop %v635
        %v672 = vtanh.pop %v640
        %v673 = vtanh.pop %v643
        %v674 = vmul.f32 %v663, %v670
        %v675 = vmul.f32 %v665, %v671
        %v676 = vmul.f32 %v667, %v672
        %v677 = vmul.f32 %v669, %v673
        %v678 = vld [vmem:[%s5] sm:$0xf]
        %v679 = vld [vmem:[%s5 + $0x4] sm:$0xf]
        %v680 = vld [vmem:[%s5 + $0x8] sm:$0xf]
        %v681 = vld [vmem:[%s5 + $0xc] sm:$0xf]
        %v682 = vpack.c.bf16 %v675, %v674
        %v683 = vpack.c.bf16 %v677, %v676
        %v684 = vld [vmem:[%s6] sm:$0xff]
        %v685 = vld [vmem:[%s6 + $0x8] sm:$0xff]
        %v686 = vld [vmem:[%s6 + $0x10] sm:$0xff]
        %v687 = vld [vmem:[%s6 + $0x18] sm:$0xff]
        %689 = vset.pattern.permute.xlu0 0
        %690 = vperm.xlu0 %689, %v684
        %v691 = vpop.permute.xlu0 %690
        %694 = vset.pattern.permute.xlu0 0
        %695 = vperm.xlu0 %694, %v685
        %v696 = vpop.permute.xlu0 %695
        %699 = vset.pattern.permute.xlu0 0
        %700 = vperm.xlu0 %699, %v686
        %v701 = vpop.permute.xlu0 %700
        %704 = vset.pattern.permute.xlu0 0
        %705 = vperm.xlu0 %704, %v687
        %v706 = vpop.permute.xlu0 %705
        %v712 = vunpack.c.l.b16 %v678
        %v713 = vunpack.c.l.b16 %v679
        %v714 = vunpack.c.l.b16 %v680
        %v715 = vunpack.c.l.b16 %v681
        %v716 = vpack.c.b16 %v713, %v712
        %v717 = vpack.c.b16 %v715, %v714
        %v719 = vsel %vm407, %v716, 0
        %v722 = vsel %vm407, %v717, 0
        %724 = vmatprep.subr.bf16.mxu0 0
        %725 = vmatpush1.bf16.msra.mxu0 %v682
        %726 = vmatprep.subr.bf16.mxu0 0
        %727 = vmatpush1.bf16.msra.mxu0 %v683
        %728 = vmatprep.subr.bf16.mxu0 0
        %729 = vmatpush1.bf16.msra.mxu0 0
        %730 = vmatprep.subr.bf16.mxu0 0
        %731 = vmatpush1.bf16.msra.mxu0 0
        %732 = vmatprep.subr.bf16.mxu0 0
        %733 = vmatpush1.bf16.msra.mxu0 0
        %734 = vmatprep.subr.bf16.mxu0 0
        %735 = vmatpush1.bf16.msra.mxu0 0
        %736 = vmatprep.subr.bf16.mxu0 0
        %737 = vmatpush1.bf16.msra.mxu0 0
        %738 = vmatprep.subr.bf16.mxu0 0
        %739 = vmatpush1.bf16.msra.mxu0 0
        %740 = vmatprep.subr.bf16.mxu0 0
        %741 = vmatpush1.bf16.msra.mxu0 0
        %742 = vmatprep.subr.bf16.mxu0 0
        %743 = vmatpush1.bf16.msra.mxu0 0
        %744 = vmatprep.subr.bf16.mxu0 0
        %745 = vmatpush1.bf16.msra.mxu0 0
        %746 = vmatprep.subr.bf16.mxu0 0
        %747 = vmatpush1.bf16.msra.mxu0 0
        %748 = vmatprep.subr.bf16.mxu0 0
        %749 = vmatpush1.bf16.msra.mxu0 0
        %750 = vmatprep.subr.bf16.mxu0 0
        %751 = vmatpush1.bf16.msra.mxu0 0
        %752 = vmatprep.subr.bf16.mxu0 0
        %753 = vmatpush1.bf16.msra.mxu0 0
        %754 = vmatprep.subr.bf16.mxu0 0
        %755 = vmatpush1.bf16.msra.mxu0 0
        %756 = vmatprep.mubr.bf16.mxu0 0
        %757 = vmatmul.mubr.bf16.gmra.mrb[0].mxu0 %v719
        %v758 = vpop.f32.mrb[0].mxu0
        %v759 = vadd.f32 %v691, %v758
        %v760 = vpop.f32.mrb[0].mxu0
        %v761 = vpop.f32.mrb[0].mxu0
        %v762 = vadd.f32 %v696, %v761
        %v763 = vpop.f32.mrb[0].mxu0
        %764 = vmatprep.mubr.bf16.mxu0 0
        %765 = vmatmul.mubr.bf16.gmra.mrb[0].mxu0 %v722
        %v766 = vpop.f32.mrb[0].mxu0
        %v767 = vadd.f32 %v701, %v766
        %v768 = vpop.f32.mrb[0].mxu0
        %v769 = vpop.f32.mrb[0].mxu0
        %v770 = vadd.f32 %v706, %v769
        %v771 = vpop.f32.mrb[0].mxu0
        %772 = vdwg.mxu0
        %v773 = vadd.f32 %v316, %v759
        %v774 = vadd.f32 %v317, %v762
        %v775 = vadd.f32 %v318, %v767
        %v776 = vadd.f32 %v319, %v770
        %vm777 = vcmask 523264
        %778 = vst.msk [vmem:[%s302] sm:$0xff] %vm777, %v773
        %779 = vst.msk [vmem:[%s302 + $0x8] sm:$0xff] %vm777, %v774
        %780 = vst.msk [vmem:[%s302 + $0x10] sm:$0xff] %vm777, %v775
        %781 = vst.msk [vmem:[%s302 + $0x18] sm:$0xff] %vm777, %v776
        %782 = vst.msk [vmem:[%s309] sm:$0xff] %vm777, %v759
        %783 = vst.msk [vmem:[%s309 + $0x8] sm:$0xff] %vm777, %v762
        %784 = vst.msk [vmem:[%s309 + $0x10] sm:$0xff] %vm777, %v767
        %785 = vst.msk [vmem:[%s309 + $0x18] sm:$0xff] %vm777, %v770
        %s786 = sand.u32 %s186, 1
        %s787 = scalar_lea.sflag [#allocation5], %s786
        %s788 = sand.u32 %s186, 1
        %s789 = smul.addr %s788, 32
        %s790 = scalar_lea.vmem [#allocation4], %s789
        %s791 = sand.u32 %s212, 1
        %s792 = scalar_lea.sflag [#allocation7], %s791
        %s793 = sand.u32 %s212, 1
        %s794 = smul.addr %s793, 32
        %s795 = scalar_lea.vmem [#allocation6], %s794
        // Predicated region
        $region49: #{tpu_custom_call.1} parent=47 // pred_check
          %p796 = pneg %p196
        $region50: #{tpu_custom_call.1} parent=47 // pred_check_branch
          %798 = sbr.rel (%p796) target = $region52
        $region51: #{tpu_custom_call.1} parent=47 // pred_region
          %s800 = ssub.s32 512, 512
          %801 = vsyncadd %s787, %s800
          %s802 = smul.addr %s26, 4
          %s803 = smul.addr %s802, 128
          %s804 = scalar_lea.hbm %s7, %s803
          %s805 = sshll.u32 %s790, 4
          %s806 = int_to_ptr.vmem [resolvable:$true] %s805
          %811 = dma.vmem_to_hbm [thread:$0]  %s806, 512, %s804, %s787, 128, 128, 8
        $region52: #{tpu_custom_call.1} parent=47 // pred_fallthru
          _
        // Predicated region
        $region53: #{tpu_custom_call.1} parent=47 // pred_check
          %p812 = pneg %p222
        $region54: #{tpu_custom_call.1} parent=47 // pred_check_branch
          %814 = sbr.rel (%p812) target = $region56
        $region55: #{tpu_custom_call.1} parent=47 // pred_region
          %s816 = ssub.s32 512, 512
          %817 = vsyncadd %s792, %s816
          %s818 = smul.addr %s26, 4
          %s819 = smul.addr %s818, 128
          %s820 = scalar_lea.hbm %s8, %s819
          %s821 = sshll.u32 %s795, 4
          %s822 = int_to_ptr.vmem [resolvable:$true] %s821
          %827 = dma.vmem_to_hbm [thread:$0]  %s822, 512, %s820, %s792, 128, 128, 8
        $region56: #{tpu_custom_call.1} parent=47 // pred_fallthru
          _
      $region48: #{tpu_custom_call.1} parent=5 // pred_fallthru
        _
      %p828 = scmp.le.s32.totalorder 2, %s21
      // Predicated region
      $region57: #{tpu_custom_call.1} parent=5 // pred_check
        %p829 = pneg %p828
      $region58: #{tpu_custom_call.1} parent=5 // pred_check_branch
        %831 = sbr.rel (%p829) target = $region60
      $region59: #{tpu_custom_call.1} parent=5 // pred_region
        %s832 = ssub.s32 %s21, 2
        // Predicated region
        $region61: #{tpu_custom_call.1} parent=59 // pred_check
          %p833 = pneg %p202
        $region62: #{tpu_custom_call.1} parent=59 // pred_check_branch
          %835 = sbr.rel (%p833) target = $region64
        $region63: #{tpu_custom_call.1} parent=59 // pred_region
          %s836 = sand.u32 %s187, 1
          %s837 = scalar_lea.sflag [#allocation5], %s836
          %s838 = sand.u32 %s187, 1
          %s839 = smul.addr %s838, 32
          %s840 = scalar_lea.vmem [#allocation4], %s839
          %841 = dma.done %s837, 512
        $region64: #{tpu_custom_call.1} parent=59 // pred_fallthru
          _
        // Predicated region
        $region65: #{tpu_custom_call.1} parent=59 // pred_check
          %p842 = pneg %p228
        $region66: #{tpu_custom_call.1} parent=59 // pred_check_branch
          %844 = sbr.rel (%p842) target = $region68
        $region67: #{tpu_custom_call.1} parent=59 // pred_region
          %s845 = sand.u32 %s213, 1
          %s846 = scalar_lea.sflag [#allocation7], %s845
          %s847 = sand.u32 %s213, 1
          %s848 = smul.addr %s847, 32
          %s849 = scalar_lea.vmem [#allocation6], %s848
          %850 = dma.done %s846, 512
        $region68: #{tpu_custom_call.1} parent=59 // pred_fallthru
          _
      $region60: #{tpu_custom_call.1} parent=5 // pred_fallthru
        _
    $region6: #{tpu_custom_call.1} parent=1 // loop_footer
      %s25 = sadd.s32 1, %s21
    $region7: #{tpu_custom_call.1} parent=1 // loop_footer_branch
      %20 = sbr.rel target = $region3
    $region8: #{tpu_custom_call.1} parent=1 // loop_exit
      _
    %851 = vsyncpa [#allocation5], 1
    %s852 = scalar_lea.sflag [#allocation5], 1
    %853 = vsyncpa %s852, 1
    %854 = vsyncpa [#allocation7], 1
    %s855 = scalar_lea.sflag [#allocation7], 1
    %856 = vsyncpa %s855, 1

</llo_original>
